<compile_context>
chip_gen: v5e
topology: v5e:2x2
jax: 0.10.0
libtpu: 0.0.40
codegen_flags: <defaults>
</compile_context>

<pallas_src>
import functools

import jax
import jax.numpy as jnp
from jax.experimental import pallas as pl
from jax.experimental.pallas import tpu as pltpu

HEAD_PAD = 128          # fused [mu | sigma | pad] head -> one unmasked 128-lane store
DEFAULT_TILE_M = 128    # rows per grid step / MXU pass (multiple of 8 for f32 tiles)


def _round_up(x, m):
    return ((x + m - 1) // m) * m


def posterior_kernel(rnn_ref, kp_ref, wh_r_ref, wh_k_ref, bh_ref,
                     whead_ref, bhead_ref, out_ref, *, L):
    # hidden = relu([rnn | kp] @ Wh + bh) without materializing the concat:
    # two accumulating MXU passes against the row-split hidden weight.
    h = jnp.dot(rnn_ref[...], wh_r_ref[...], preferred_element_type=jnp.float32)
    h = h + jnp.dot(kp_ref[...], wh_k_ref[...], preferred_element_type=jnp.float32)
    h = jnp.maximum(h + bh_ref[...], 0.0)

    # fused head: [mu | sigma_raw | pad] = h @ Whead + bhead  (lane-dense 128)
    y = jnp.dot(h, whead_ref[...], preferred_element_type=jnp.float32) + bhead_ref[...]

    # softplus (torch threshold=20 semantics) + 1e-4 on the sigma lanes only.
    col = jax.lax.broadcasted_iota(jnp.int32, y.shape, 1)
    sigma_lane = (col >= L) & (col < 2 * L)
    sp = jnp.where(y > 20.0, y, jnp.log1p(jnp.exp(jnp.minimum(y, 20.0)))) + 1e-4
    out_ref[...] = jnp.where(sigma_lane, sp, y)


def prepare_params(params, num_rnn_units):
    """One-time param prep: split hidden weight by input, fuse/pad the heads."""
    wh, bh = params["wh"], params["bh"]   # (U+K, D), (D,)
    wm, bm = params["wm"], params["bm"]   # (D, L), (L,)
    ws, bs = params["ws"], params["bs"]   # (D, L), (L,)
    D, L = wm.shape
    assert 2 * L <= HEAD_PAD
    w_head = jnp.zeros((D, HEAD_PAD), jnp.float32)
    w_head = w_head.at[:, :L].set(wm).at[:, L:2 * L].set(ws)
    b_head = jnp.zeros((1, HEAD_PAD), jnp.float32)
    b_head = b_head.at[0, :L].set(bm).at[0, L:2 * L].set(bs)
    return {
        "wh_r": wh[:num_rnn_units],          # (U, D)  rnn-state part of hidden weight
        "wh_k": wh[num_rnn_units:],          # (K, D)  keypoint part of hidden weight
        "bh": bh.reshape(1, -1),             # (1, D)
        "w_head": w_head,                    # (D, 128) fused mu|sigma|pad
        "b_head": b_head,                    # (1, 128)
        "L": int(L),
    }


def posterior_net(rnn_state, observed_keypoints, fused, *, tile_m=DEFAULT_TILE_M):
    """rnn_state: (..., U); observed_keypoints: (..., num_keypoints*3).

    All leading dims (e.g. a whole (T, B) scan's worth of steps) are flattened
    into rows and processed by ONE gridded pallas_call with VMEM-resident
    weights (constant index_map) and 128-row MXU tiles.
    """
    L = fused["L"]
    lead = rnn_state.shape[:-1]
    U = rnn_state.shape[-1]
    K = observed_keypoints.shape[-1]
    D = fused["bh"].shape[-1]

    rnn2 = rnn_state.reshape(-1, U)
    kp2 = observed_keypoints.reshape(-1, K)
    rows = rnn2.shape[0]

    # Row tile: multiple of 8 (f32 sublane), capped at tile_m; pad rows so every
    # BlockSpec block is full (padded rows are discarded after the call).
    tm = min(tile_m, _round_up(rows, 8))
    rows_p = _round_up(rows, tm)
    if rows_p != rows:
        rnn2 = jnp.pad(rnn2, ((0, rows_p - rows), (0, 0)))
        kp2 = jnp.pad(kp2, ((0, rows_p - rows), (0, 0)))

    const = lambda i: (0, 0)  # weights/biases: DMA'd once, resident across grid steps

    out = pl.pallas_call(
        functools.partial(posterior_kernel, L=L),
        out_shape=jax.ShapeDtypeStruct((rows_p, HEAD_PAD), jnp.float32),
        grid_spec=pltpu.PrefetchScalarGridSpec(
            num_scalar_prefetch=0,
            grid=(rows_p // tm,),
            in_specs=[
                pl.BlockSpec((tm, U), lambda i: (i, 0)),       # rnn rows
                pl.BlockSpec((tm, K), lambda i: (i, 0)),       # keypoint rows
                pl.BlockSpec((U, D), const),                   # wh_r  (resident)
                pl.BlockSpec((K, D), const),                   # wh_k  (resident)
                pl.BlockSpec((1, D), const),                   # bh    (resident)
                pl.BlockSpec((D, HEAD_PAD), const),            # w_head (resident)
                pl.BlockSpec((1, HEAD_PAD), const),            # b_head (resident)
            ],
            out_specs=pl.BlockSpec((tm, HEAD_PAD), lambda i: (i, 0)),
        ),
        compiler_params=pltpu.CompilerParams(
            # Row tiles are independent -> shard across both TCs on v7x.
            dimension_semantics=("parallel",),
        ),
    )(rnn2, kp2, fused["wh_r"], fused["wh_k"], fused["bh"],
      fused["w_head"], fused["b_head"])

    mu = out[:rows, :L].reshape(*lead, L)
    sigma = out[:rows, L:2 * L].reshape(*lead, L)
    return mu, sigma


def _reference(rnn_state, observed_keypoints, params):
    x = jnp.concatenate([rnn_state, observed_keypoints], axis=-1)
    h = jax.nn.relu(x @ params["wh"] + params["bh"])
    mu = h @ params["wm"] + params["bm"]
    s_raw = h @ params["ws"] + params["bs"]
    sigma = jax.nn.softplus(s_raw) + 1e-4
    return mu, sigma


if __name__ == "__main__":
    # cfg: num_keypoints=8, num_rnn_units=32, posterior_net_dim=64, latent_code_size=16
    T, B = 32, 8
    num_keypoints = 8
    num_rnn_units = 32
    posterior_net_dim = 64
    latent_code_size = 16
    kp_dim = num_keypoints * 3
    hidden_indim = kp_dim + num_rnn_units

    key = jax.random.PRNGKey(0)
    ks = jax.random.split(key, 8)

    params = {
        "wh": 0.1 * jax.random.normal(ks[0], (hidden_indim, posterior_net_dim), jnp.float32),
        "bh": 0.1 * jax.random.normal(ks[1], (posterior_net_dim,), jnp.float32),
        "wm": 0.1 * jax.random.normal(ks[2], (posterior_net_dim, latent_code_size), jnp.float32),
        "bm": 0.1 * jax.random.normal(ks[3], (latent_code_size,), jnp.float32),
        "ws": 0.1 * jax.random.normal(ks[4], (posterior_net_dim, latent_code_size), jnp.float32),
        "bs": 0.1 * jax.random.normal(ks[5], (latent_code_size,), jnp.float32),
    }
    fused = prepare_params(params, num_rnn_units)   # one-time split/fuse/pad

    # A whole (T, B) scan's worth of steps handled by ONE gridded call
    # (weights loaded into VMEM once, 2 grid steps of 128 rows each).
    rnn_state = jax.random.normal(ks[6], (T, B, num_rnn_units), jnp.float32)
    observed_keypoints = jax.random.normal(ks[7], (T, B, kp_dim), jnp.float32)

    mu, sigma = posterior_net(rnn_state, observed_keypoints, fused)
    jax.block_until_ready((mu, sigma))

    mu_ref, sigma_ref = _reference(rnn_state, observed_keypoints, params)
    assert mu.shape == (T, B, latent_code_size) and sigma.shape == (T, B, latent_code_size)
    assert jnp.allclose(mu, mu_ref, atol=1e-4, rtol=1e-4)
    assert jnp.allclose(sigma, sigma_ref, atol=1e-4, rtol=1e-4)
    assert jnp.all(sigma > 0)

    # Also exercise the small per-step (B,) path (row tile clamps to 8).
    mu1, sigma1 = posterior_net(rnn_state[0], observed_keypoints[0], fused)
    jax.block_until_ready((mu1, sigma1))
    mu1_ref, sigma1_ref = _reference(rnn_state[0], observed_keypoints[0], params)
    assert mu1.shape == (B, latent_code_size) and sigma1.shape == (B, latent_code_size)
    assert jnp.allclose(mu1, mu1_ref, atol=1e-4, rtol=1e-4)
    assert jnp.allclose(sigma1, sigma1_ref, atol=1e-4, rtol=1e-4)

    print("KERNEL_OK")
</pallas_src>

<mosaic_0001>
module attributes {stable_mosaic.version = 11 : i64} {
  func.func @posterior_kernel(%arg0: i32, %arg1: memref<128x32xf32, #tpu.memory_space<vmem>>, %arg2: memref<128x24xf32, #tpu.memory_space<vmem>>, %arg3: memref<32x64xf32, #tpu.memory_space<vmem>>, %arg4: memref<24x64xf32, #tpu.memory_space<vmem>>, %arg5: memref<1x64xf32, #tpu.memory_space<vmem>>, %arg6: memref<64x128xf32, #tpu.memory_space<vmem>>, %arg7: memref<1x128xf32, #tpu.memory_space<vmem>>, %arg8: memref<128x128xf32, #tpu.memory_space<vmem>>) attributes {dimension_semantics = [#tpu.dimension_semantics<parallel>], iteration_bounds = array<i64: 2>, scalar_prefetch = 0 : i64, scratch_operands = 0 : i64, tpu.core_type = #tpu.core_type<tc>, window_params = [{transform_indices = @transform_0, window_bounds = array<i64: 128, 32>}, {transform_indices = @transform_1, window_bounds = array<i64: 128, 24>}, {pipeline_mode = #tpu.pipeline_mode<synchronous>, transform_indices = @transform_2, window_bounds = array<i64: 32, 64>}, {pipeline_mode = #tpu.pipeline_mode<synchronous>, transform_indices = @transform_3, window_bounds = array<i64: 24, 64>}, {pipeline_mode = #tpu.pipeline_mode<synchronous>, transform_indices = @transform_4, window_bounds = array<i64: 1, 64>}, {pipeline_mode = #tpu.pipeline_mode<synchronous>, transform_indices = @transform_5, window_bounds = array<i64: 64, 128>}, {pipeline_mode = #tpu.pipeline_mode<synchronous>, transform_indices = @transform_6, window_bounds = array<i64: 1, 128>}, {transform_indices = @transform_7, window_bounds = array<i64: 128, 128>}]} {
    %c0 = arith.constant 0 : index
    %c0_0 = arith.constant 0 : index
    %0 = vector.load %arg1[%c0, %c0_0] : memref<128x32xf32, #tpu.memory_space<vmem>>, vector<128x32xf32>
    %c0_1 = arith.constant 0 : index
    %c0_2 = arith.constant 0 : index
    %1 = vector.load %arg3[%c0_1, %c0_2] : memref<32x64xf32, #tpu.memory_space<vmem>>, vector<32x64xf32>
    %cst = arith.constant dense<0.000000e+00> : vector<128x64xf32>
    %2 = tpu.matmul %0, %1, %cst {dimension_numbers = #tpu.dot_dimension_numbers<[1], [0], [0], [1], [0, 0, 1, 1], [], []>} : vector<128x32xf32>, vector<32x64xf32>, vector<128x64xf32> -> vector<128x64xf32>
    %c0_3 = arith.constant 0 : index
    %c0_4 = arith.constant 0 : index
    %3 = vector.load %arg2[%c0_3, %c0_4] : memref<128x24xf32, #tpu.memory_space<vmem>>, vector<128x24xf32>
    %c0_5 = arith.constant 0 : index
    %c0_6 = arith.constant 0 : index
    %4 = vector.load %arg4[%c0_5, %c0_6] : memref<24x64xf32, #tpu.memory_space<vmem>>, vector<24x64xf32>
    %cst_7 = arith.constant dense<0.000000e+00> : vector<128x64xf32>
    %5 = tpu.matmul %3, %4, %cst_7 {dimension_numbers = #tpu.dot_dimension_numbers<[1], [0], [0], [1], [0, 0, 1, 1], [], []>} : vector<128x24xf32>, vector<24x64xf32>, vector<128x64xf32> -> vector<128x64xf32>
    %6 = arith.addf %2, %5 : vector<128x64xf32>
    %c0_8 = arith.constant 0 : index
    %c0_9 = arith.constant 0 : index
    %7 = vector.load %arg5[%c0_8, %c0_9] : memref<1x64xf32, #tpu.memory_space<vmem>>, vector<1x64xf32>
    %8 = vector.broadcast %7 : vector<1x64xf32> to vector<128x64xf32>
    %9 = arith.addf %6, %8 : vector<128x64xf32>
    %cst_10 = arith.constant 0.000000e+00 : f32
    %10 = vector.broadcast %cst_10 : f32 to vector<128x64xf32>
    %11 = arith.maximumf %9, %10 : vector<128x64xf32>
    %c0_11 = arith.constant 0 : index
    %c0_12 = arith.constant 0 : index
    %12 = vector.load %arg6[%c0_11, %c0_12] : memref<64x128xf32, #tpu.memory_space<vmem>>, vector<64x128xf32>
    %cst_13 = arith.constant dense<0.000000e+00> : vector<128x128xf32>
    %13 = tpu.matmul %11, %12, %cst_13 {dimension_numbers = #tpu.dot_dimension_numbers<[1], [0], [0], [1], [0, 0, 1, 1], [], []>} : vector<128x64xf32>, vector<64x128xf32>, vector<128x128xf32> -> vector<128x128xf32>
    %c0_14 = arith.constant 0 : index
    %c0_15 = arith.constant 0 : index
    %14 = vector.load %arg7[%c0_14, %c0_15] : memref<1x128xf32, #tpu.memory_space<vmem>>, vector<1x128xf32>
    %15 = vector.broadcast %14 : vector<1x128xf32> to vector<128x128xf32>
    %16 = arith.addf %13, %15 : vector<128x128xf32>
    %17 = tpu.iota {dimensions = array<i32: 1>} : vector<128x128xi32>
    %c16_i32 = arith.constant 16 : i32
    %18 = vector.broadcast %c16_i32 : i32 to vector<128x128xi32>
    %19 = arith.cmpi sge, %17, %18 : vector<128x128xi32>
    %c32_i32 = arith.constant 32 : i32
    %20 = vector.broadcast %c32_i32 : i32 to vector<128x128xi32>
    %21 = arith.cmpi slt, %17, %20 : vector<128x128xi32>
    %22 = arith.andi %19, %21 : vector<128x128xi1>
    %cst_16 = arith.constant 2.000000e+01 : f32
    %23 = vector.broadcast %cst_16 : f32 to vector<128x128xf32>
    %24 = arith.cmpf ogt, %16, %23 : vector<128x128xf32>
    %cst_17 = arith.constant 2.000000e+01 : f32
    %25 = vector.broadcast %cst_17 : f32 to vector<128x128xf32>
    %26 = arith.minimumf %16, %25 : vector<128x128xf32>
    %27 = math.exp %26 : vector<128x128xf32>
    %28 = math.log1p %27 : vector<128x128xf32>
    %29 = arith.select %24, %16, %28 : vector<128x128xi1>, vector<128x128xf32>
    %cst_18 = arith.constant 9.99999974E-5 : f32
    %30 = vector.broadcast %cst_18 : f32 to vector<128x128xf32>
    %31 = arith.addf %29, %30 : vector<128x128xf32>
    %32 = arith.select %22, %31, %16 : vector<128x128xi1>, vector<128x128xf32>
    %c0_19 = arith.constant 0 : index
    %c0_20 = arith.constant 0 : index
    %33 = vector.load %arg8[%c0_19, %c0_20] : memref<128x128xf32, #tpu.memory_space<vmem>>, vector<128x128xf32>
    tpu.vector_store %arg8[%c0_19, %c0_20], %32 {strides = array<i32>} : memref<128x128xf32, #tpu.memory_space<vmem>>, vector<128x128xf32>,
    return
  }
  func.func @transform_0(%arg0: i32) -> (i32, i32) {
    %c0_i32 = arith.constant 0 : i32
    %c0_i32_0 = arith.constant 0 : i32
    return %arg0, %c0_i32 : i32, i32
  }
  func.func @transform_1(%arg0: i32) -> (i32, i32) {
    %c0_i32 = arith.constant 0 : i32
    %c0_i32_0 = arith.constant 0 : i32
    return %arg0, %c0_i32 : i32, i32
  }
  func.func @transform_2(%arg0: i32) -> (i32, i32) {
    %c0_i32 = arith.constant 0 : i32
    %c0_i32_0 = arith.constant 0 : i32
    %c0_i32_1 = arith.constant 0 : i32
    return %c0_i32, %c0_i32_0 : i32, i32
  }
  func.func @transform_3(%arg0: i32) -> (i32, i32) {
    %c0_i32 = arith.constant 0 : i32
    %c0_i32_0 = arith.constant 0 : i32
    %c0_i32_1 = arith.constant 0 : i32
    return %c0_i32, %c0_i32_0 : i32, i32
  }
  func.func @transform_4(%arg0: i32) -> (i32, i32) {
    %c0_i32 = arith.constant 0 : i32
    %c0_i32_0 = arith.constant 0 : i32
    %c0_i32_1 = arith.constant 0 : i32
    return %c0_i32, %c0_i32_0 : i32, i32
  }
  func.func @transform_5(%arg0: i32) -> (i32, i32) {
    %c0_i32 = arith.constant 0 : i32
    %c0_i32_0 = arith.constant 0 : i32
    %c0_i32_1 = arith.constant 0 : i32
    return %c0_i32, %c0_i32_0 : i32, i32
  }
  func.func @transform_6(%arg0: i32) -> (i32, i32) {
    %c0_i32 = arith.constant 0 : i32
    %c0_i32_0 = arith.constant 0 : i32
    %c0_i32_1 = arith.constant 0 : i32
    return %c0_i32, %c0_i32_0 : i32, i32
  }
  func.func @transform_7(%arg0: i32) -> (i32, i32) {
    %c0_i32 = arith.constant 0 : i32
    %c0_i32_0 = arith.constant 0 : i32
    return %arg0, %c0_i32 : i32, i32
  }
}

</mosaic_0001>

<llo_original>
// kernel: tpu_custom_call.1
$region0: #{tpu_custom_call.1}
  #allocation0 [shape = 'u32[]', space=smem, size = 0x4, offset = 0x4, fixed_abs, tag = 'smem constant byte address 0x4 - core index']
  #allocation1 [shape = 'u32[72,128]{1,0:T(1,128)}', space=vmem, size = 0x9000, scoped, tag = 'internal scratch']
  %s0 = inlined_call_operand.vmem [shape: f32[256,32], index: 0, kind: input, shape index: {}]
  %s1 = inlined_call_operand.vmem [shape: f32[256,24], index: 1, kind: input, shape index: {}]
  %s2 = inlined_call_operand.vmem [shape: f32[32,64], index: 2, kind: input, shape index: {}]
  %s3 = inlined_call_operand.vmem [shape: f32[24,64], index: 3, kind: input, shape index: {}]
  %s4 = inlined_call_operand.vmem [shape: f32[1,64], index: 4, kind: input, shape index: {}]
  %s5 = inlined_call_operand.vmem [shape: f32[64,128], index: 5, kind: input, shape index: {}]
  %s6 = inlined_call_operand.vmem [shape: f32[1,128], index: 6, kind: input, shape index: {}]
  %s7 = inlined_call_operand.hbm [shape: f32[256,128], index: 7, kind: output, shape index: {}]
  %s8 = sld [smem:[#allocation0]]
  $region61: #{tpu_custom_call.1} parent=0
    _
  %s10 = ssub.s32 1, %s8
  %s11 = scalar_select 0, %s10, %s8
  $region1: #{tpu_custom_call.1} parent=0
    #allocation2 [shape = 'u8[131072]{0}', space=vmem, size = 0x20000, scoped, tag = 'output window, operand 0']
    #allocation3 [shape = 's32[2]{0}', space=sflag, size = 0x8, scoped, tag = 'scoped memory for tpu_custom_call.1']
    %12 = vsyncpa [#allocation3], 0
    %s13 = scalar_lea.sflag [#allocation3], 1
    %14 = vsyncpa %s13, 0
    loop: start=0, step=1, limit=4
    $region2: #{tpu_custom_call.1} parent=1 // loop_pre_header
      _
    $region3: #{tpu_custom_call.1} parent=1 // loop_header
      %s16 = sphi 0, %s20
      %p17 = scmp.ge.s32.totalorder %s16, 4
      %s26 = sphi 0, %s28
      %s29 = sphi 0, %s26
      %s30 = sphi 0, %s29
      %s46 = sphi 0, %s30
      %s52 = sphi 0, %s54
      %s55 = sphi 0, %s52
      %s56 = sphi 0, %s55
      %s72 = sphi 0, %s56
      %s76 = sphi 0, %s76
      %s78 = sphi 0, %s76
      %s79 = sphi 0, %s78
      %s93 = sphi 0, %s79
      %s97 = sphi 0, %s97
      %s99 = sphi 0, %s97
      %s100 = sphi 0, %s99
      %s114 = sphi 0, %s100
      %s118 = sphi 0, %s118
      %s120 = sphi 0, %s118
      %s121 = sphi 0, %s120
      %s135 = sphi 0, %s121
      %s139 = sphi 0, %s139
      %s141 = sphi 0, %s139
      %s142 = sphi 0, %s141
      %s156 = sphi 0, %s142
      %s160 = sphi 0, %s160
      %s162 = sphi 0, %s160
      %s163 = sphi 0, %s162
      %s177 = sphi 0, %s163
      %s183 = sphi 0, %s185
      %s186 = sphi 0, %s183
      %s187 = sphi 0, %s186
      %s203 = sphi 0, %s187
    $region4: #{tpu_custom_call.1} parent=1 // loop_header_branch
      %19 = sbr.rel (%p17) target = $region8
    $region5: #{tpu_custom_call.1} parent=1 // loop_body
      %s21 = ssub.s32 %s16, 1
      %s22 = ssub.s32 %s16, 2
      %s23 = sadd.s32 %s16, 1
      %s24 = ssub.s32 %s16, %s23
      %p25 = scmp.eq.s32.totalorder %s24, 0
      %s27 = sadd.s32 %s26, 1
      %s28 = scalar_select %p25, %s26, %s27
      %p31 = pneg %p25
      %p32 = scmp.eq.s32.totalorder %s16, 1
      %p33 = por %p31, %p32
      %p34 = scmp.ne.s32.totalorder %s26, %s29
      %p35 = scmp.eq.s32.totalorder %s16, 0
      %p36 = por %p34, %p35
      %p37 = scmp.ne.s32.totalorder %s26, %s29
      %p38 = scmp.eq.s32.totalorder %s21, 1
      %p39 = por %p37, %p38
      %p40 = scmp.ne.s32.totalorder %s29, %s30
      %p41 = scmp.eq.s32.totalorder %s21, 0
      %p42 = por %p40, %p41
      %p43 = scmp.ne.s32.totalorder %s29, %s30
      %p44 = scmp.eq.s32.totalorder %s22, 1
      %p45 = por %p43, %p44
      %p47 = scmp.ne.s32.totalorder %s30, %s46
      %p48 = scmp.eq.s32.totalorder %s22, 0
      %p49 = por %p47, %p48
      %s50 = ssub.s32 %s16, %s23
      %p51 = scmp.eq.s32.totalorder %s50, 0
      %s53 = sadd.s32 %s52, 1
      %s54 = scalar_select %p51, %s52, %s53
      %p57 = pneg %p51
      %p58 = scmp.eq.s32.totalorder %s16, 1
      %p59 = por %p57, %p58
      %p60 = scmp.ne.s32.totalorder %s52, %s55
      %p61 = scmp.eq.s32.totalorder %s16, 0
      %p62 = por %p60, %p61
      %p63 = scmp.ne.s32.totalorder %s52, %s55
      %p64 = scmp.eq.s32.totalorder %s21, 1
      %p65 = por %p63, %p64
      %p66 = scmp.ne.s32.totalorder %s55, %s56
      %p67 = scmp.eq.s32.totalorder %s21, 0
      %p68 = por %p66, %p67
      %p69 = scmp.ne.s32.totalorder %s55, %s56
      %p70 = scmp.eq.s32.totalorder %s22, 1
      %p71 = por %p69, %p70
      %p73 = scmp.ne.s32.totalorder %s56, %s72
      %p74 = scmp.eq.s32.totalorder %s22, 0
      %p75 = por %p73, %p74
      %s77 = sadd.s32 %s76, 1
      %p80 = scmp.eq.s32.totalorder %s16, 1
      %p81 = scmp.ne.s32.totalorder %s76, %s78
      %p82 = scmp.eq.s32.totalorder %s16, 0
      %p83 = por %p81, %p82
      %p84 = scmp.ne.s32.totalorder %s76, %s78
      %p85 = scmp.eq.s32.totalorder %s21, 1
      %p86 = por %p84, %p85
      %p87 = scmp.ne.s32.totalorder %s78, %s79
      %p88 = scmp.eq.s32.totalorder %s21, 0
      %p89 = por %p87, %p88
      %p90 = scmp.ne.s32.totalorder %s78, %s79
      %p91 = scmp.eq.s32.totalorder %s22, 1
      %p92 = por %p90, %p91
      %p94 = scmp.ne.s32.totalorder %s79, %s93
      %p95 = scmp.eq.s32.totalorder %s22, 0
      %p96 = por %p94, %p95
      %s98 = sadd.s32 %s97, 1
      %p101 = scmp.eq.s32.totalorder %s16, 1
      %p102 = scmp.ne.s32.totalorder %s97, %s99
      %p103 = scmp.eq.s32.totalorder %s16, 0
      %p104 = por %p102, %p103
      %p105 = scmp.ne.s32.totalorder %s97, %s99
      %p106 = scmp.eq.s32.totalorder %s21, 1
      %p107 = por %p105, %p106
      %p108 = scmp.ne.s32.totalorder %s99, %s100
      %p109 = scmp.eq.s32.totalorder %s21, 0
      %p110 = por %p108, %p109
      %p111 = scmp.ne.s32.totalorder %s99, %s100
      %p112 = scmp.eq.s32.totalorder %s22, 1
      %p113 = por %p111, %p112
      %p115 = scmp.ne.s32.totalorder %s100, %s114
      %p116 = scmp.eq.s32.totalorder %s22, 0
      %p117 = por %p115, %p116
      %s119 = sadd.s32 %s118, 1
      %p122 = scmp.eq.s32.totalorder %s16, 1
      %p123 = scmp.ne.s32.totalorder %s118, %s120
      %p124 = scmp.eq.s32.totalorder %s16, 0
      %p125 = por %p123, %p124
      %p126 = scmp.ne.s32.totalorder %s118, %s120
      %p127 = scmp.eq.s32.totalorder %s21, 1
      %p128 = por %p126, %p127
      %p129 = scmp.ne.s32.totalorder %s120, %s121
      %p130 = scmp.eq.s32.totalorder %s21, 0
      %p131 = por %p129, %p130
      %p132 = scmp.ne.s32.totalorder %s120, %s121
      %p133 = scmp.eq.s32.totalorder %s22, 1
      %p134 = por %p132, %p133
      %p136 = scmp.ne.s32.totalorder %s121, %s135
      %p137 = scmp.eq.s32.totalorder %s22, 0
      %p138 = por %p136, %p137
      %s140 = sadd.s32 %s139, 1
      %p143 = scmp.eq.s32.totalorder %s16, 1
      %p144 = scmp.ne.s32.totalorder %s139, %s141
      %p145 = scmp.eq.s32.totalorder %s16, 0
      %p146 = por %p144, %p145
      %p147 = scmp.ne.s32.totalorder %s139, %s141
      %p148 = scmp.eq.s32.totalorder %s21, 1
      %p149 = por %p147, %p148
      %p150 = scmp.ne.s32.totalorder %s141, %s142
      %p151 = scmp.eq.s32.totalorder %s21, 0
      %p152 = por %p150, %p151
      %p153 = scmp.ne.s32.totalorder %s141, %s142
      %p154 = scmp.eq.s32.totalorder %s22, 1
      %p155 = por %p153, %p154
      %p157 = scmp.ne.s32.totalorder %s142, %s156
      %p158 = scmp.eq.s32.totalorder %s22, 0
      %p159 = por %p157, %p158
      %s161 = sadd.s32 %s160, 1
      %p164 = scmp.eq.s32.totalorder %s16, 1
      %p165 = scmp.ne.s32.totalorder %s160, %s162
      %p166 = scmp.eq.s32.totalorder %s16, 0
      %p167 = por %p165, %p166
      %p168 = scmp.ne.s32.totalorder %s160, %s162
      %p169 = scmp.eq.s32.totalorder %s21, 1
      %p170 = por %p168, %p169
      %p171 = scmp.ne.s32.totalorder %s162, %s163
      %p172 = scmp.eq.s32.totalorder %s21, 0
      %p173 = por %p171, %p172
      %p174 = scmp.ne.s32.totalorder %s162, %s163
      %p175 = scmp.eq.s32.totalorder %s22, 1
      %p176 = por %p174, %p175
      %p178 = scmp.ne.s32.totalorder %s163, %s177
      %p179 = scmp.eq.s32.totalorder %s22, 0
      %p180 = por %p178, %p179
      %s181 = ssub.s32 %s16, %s23
      %p182 = scmp.eq.s32.totalorder %s181, 0
      %s184 = sadd.s32 %s183, 1
      %s185 = scalar_select %p182, %s183, %s184
      %p188 = pneg %p182
      %p189 = scmp.eq.s32.totalorder %s16, 1
      %p190 = por %p188, %p189
      %p191 = scmp.ne.s32.totalorder %s183, %s186
      %p192 = scmp.eq.s32.totalorder %s16, 0
      %p193 = por %p191, %p192
      %p194 = scmp.ne.s32.totalorder %s183, %s186
      %p195 = scmp.eq.s32.totalorder %s21, 1
      %p196 = por %p194, %p195
      %p197 = scmp.ne.s32.totalorder %s186, %s187
      %p198 = scmp.eq.s32.totalorder %s21, 0
      %p199 = por %p197, %p198
      %p200 = scmp.ne.s32.totalorder %s186, %s187
      %p201 = scmp.eq.s32.totalorder %s22, 1
      %p202 = por %p200, %p201
      %p204 = scmp.ne.s32.totalorder %s187, %s203
      %p205 = scmp.eq.s32.totalorder %s22, 0
      %p206 = por %p204, %p205
      %p207 = scmp.le.s32.totalorder 1, %s16
      %p208 = scmp.lt.s32.totalorder %s16, 3
      %p209 = pnand %p207, %p208
      %p210 = pneg %p209
      // Predicated region
      $region9: #{tpu_custom_call.1} parent=5 // pred_check
        _
      $region10: #{tpu_custom_call.1} parent=5 // pred_check_branch
        %212 = sbr.rel (%p209) target = $region12
      $region11: #{tpu_custom_call.1} parent=5 // pred_region
        %s213 = ssub.s32 %s16, 1
        // Predicated region
        $region13: #{tpu_custom_call.1} parent=11 // pred_check
          %p214 = pneg %p89
        $region14: #{tpu_custom_call.1} parent=11 // pred_check_branch
          %216 = sbr.rel (%p214) target = $region16
        $region15: #{tpu_custom_call.1} parent=11 // pred_region
          _
        $region16: #{tpu_custom_call.1} parent=11 // pred_fallthru
          _
        // Predicated region
        $region17: #{tpu_custom_call.1} parent=11 // pred_check
          %p217 = pneg %p110
        $region18: #{tpu_custom_call.1} parent=11 // pred_check_branch
          %219 = sbr.rel (%p217) target = $region20
        $region19: #{tpu_custom_call.1} parent=11 // pred_region
          _
        $region20: #{tpu_custom_call.1} parent=11 // pred_fallthru
          _
        // Predicated region
        $region21: #{tpu_custom_call.1} parent=11 // pred_check
          %p220 = pneg %p131
        $region22: #{tpu_custom_call.1} parent=11 // pred_check_branch
          %222 = sbr.rel (%p220) target = $region24
        $region23: #{tpu_custom_call.1} parent=11 // pred_region
          _
        $region24: #{tpu_custom_call.1} parent=11 // pred_fallthru
          _
        // Predicated region
        $region25: #{tpu_custom_call.1} parent=11 // pred_check
          %p223 = pneg %p152
        $region26: #{tpu_custom_call.1} parent=11 // pred_check_branch
          %225 = sbr.rel (%p223) target = $region28
        $region27: #{tpu_custom_call.1} parent=11 // pred_region
          _
        $region28: #{tpu_custom_call.1} parent=11 // pred_fallthru
          _
        // Predicated region
        $region29: #{tpu_custom_call.1} parent=11 // pred_check
          %p226 = pneg %p173
        $region30: #{tpu_custom_call.1} parent=11 // pred_check_branch
          %228 = sbr.rel (%p226) target = $region32
        $region31: #{tpu_custom_call.1} parent=11 // pred_region
          _
        $region32: #{tpu_custom_call.1} parent=11 // pred_fallthru
          _
      $region12: #{tpu_custom_call.1} parent=5 // pred_fallthru
        _
      %p229 = scmp.lt.s32.totalorder %s16, 2
      // Predicated region
      $region33: #{tpu_custom_call.1} parent=5 // pred_check
        %p230 = pneg %p229
      $region34: #{tpu_custom_call.1} parent=5 // pred_check_branch
        %232 = sbr.rel (%p230) target = $region36
      $region35: #{tpu_custom_call.1} parent=5 // pred_region
        // Predicated region
        $region37: #{tpu_custom_call.1} parent=35 // pred_check
          %p233 = pneg %p36
        $region38: #{tpu_custom_call.1} parent=35 // pred_check_branch
          %235 = sbr.rel (%p233) target = $region40
        $region39: #{tpu_custom_call.1} parent=35 // pred_region
          %s236 = smul.u32 16, %s16
          %p237 = scmp.lt.s32.totalorder %s236, 31
          %s238 = scalar_select %p237, %s236, 31
          %s239 = smul.addr %s238, 8
          %s240 = scalar_lea.vmem %s0, %s239
          %s241 = smul.u32 16, %s16
        $region40: #{tpu_custom_call.1} parent=35 // pred_fallthru
          _
        // Predicated region
        $region41: #{tpu_custom_call.1} parent=35 // pred_check
          %p242 = pneg %p62
        $region42: #{tpu_custom_call.1} parent=35 // pred_check_branch
          %244 = sbr.rel (%p242) target = $region44
        $region43: #{tpu_custom_call.1} parent=35 // pred_region
          %s245 = smul.u32 16, %s16
          %p246 = scmp.lt.s32.totalorder %s245, 31
          %s247 = scalar_select %p246, %s245, 31
          %s248 = smul.addr %s247, 8
          %s249 = scalar_lea.vmem %s1, %s248
          %s250 = smul.u32 16, %s16
        $region44: #{tpu_custom_call.1} parent=35 // pred_fallthru
          _
      $region36: #{tpu_custom_call.1} parent=5 // pred_fallthru
        _
      %p251 = scmp.le.s32.totalorder 1, %s16
      %p252 = scmp.lt.s32.totalorder %s16, 3
      %p253 = pnand %p251, %p252
      %p254 = pneg %p253
      // Predicated region
      $region45: #{tpu_custom_call.1} parent=5 // pred_check
        _
      $region46: #{tpu_custom_call.1} parent=5 // pred_check_branch
        %256 = sbr.rel (%p253) target = $region48
      $region47: #{tpu_custom_call.1} parent=5 // pred_region
        %s257 = ssub.s32 %s16, 1
        %s258 = smul.u32 16, %s21
        %p259 = scmp.lt.s32.totalorder %s258, 31
        %s260 = scalar_select %p259, %s258, 31
        %s261 = smul.addr %s260, 8
        %s262 = scalar_lea.vmem %s0, %s261
        %p263 = pneg %p42
        %p264 = pneg %p39
        %s265 = smul.u32 16, %s21
        %p266 = scmp.lt.s32.totalorder %s265, 31
        %s267 = scalar_select %p266, %s265, 31
        %s268 = smul.addr %s267, 8
        %s269 = scalar_lea.vmem %s1, %s268
        %p270 = pneg %p68
        %p271 = pneg %p65
        %p272 = pneg %p89
        %p273 = pneg %p86
        %p274 = pneg %p110
        %p275 = pneg %p107
        %p276 = pneg %p131
        %p277 = pneg %p128
        %p278 = pneg %p152
        %p279 = pneg %p149
        %p280 = pneg %p173
        %p281 = pneg %p170
        %p282 = pneg %p199
        %p283 = pneg %p196
        %s284 = sand.u32 %s186, 1
        %s285 = scalar_lea.sflag [#allocation3], %s284
        %s286 = sand.u32 %s186, 1
        %s287 = smul.addr %s286, 128
        %s288 = scalar_lea.vmem [#allocation2], %s287
        %s289 = smul.u32 16, %s21
        %p290 = scmp.lt.s32.totalorder %s289, 31
        %s291 = scalar_select %p290, %s289, 31
        %s292 = smul.addr %s291, 8
        %s293 = scalar_lea.vmem %s0, %s292
        %s294 = smul.u32 16, %s21
        %s295 = smul.u32 16, %s21
        %p296 = scmp.lt.s32.totalorder %s295, 31
        %s297 = scalar_select %p296, %s295, 31
        %s298 = smul.addr %s297, 8
        %s299 = scalar_lea.vmem %s1, %s298
        %s300 = smul.u32 16, %s21
        %s301 = smul.u32 16, %s21
        %v302 = vld [vmem:[%s293] sm:$0xff]
        %v303 = vld [vmem:[%s293 + $0x8] sm:$0xff]
        %v304 = vld [vmem:[%s293 + $0x10] sm:$0xff]
        %v305 = vld [vmem:[%s293 + $0x18] sm:$0xff]
        %v306 = vld [vmem:[%s293 + $0x20] sm:$0xff]
        %v307 = vld [vmem:[%s293 + $0x28] sm:$0xff]
        %v308 = vld [vmem:[%s293 + $0x30] sm:$0xff]
        %v309 = vld [vmem:[%s293 + $0x38] sm:$0xff]
        %v310 = vld [vmem:[%s293 + $0x40] sm:$0xff]
        %v311 = vld [vmem:[%s293 + $0x48] sm:$0xff]
        %v312 = vld [vmem:[%s293 + $0x50] sm:$0xff]
        %v313 = vld [vmem:[%s293 + $0x58] sm:$0xff]
        %v314 = vld [vmem:[%s293 + $0x60] sm:$0xff]
        %v315 = vld [vmem:[%s293 + $0x68] sm:$0xff]
        %v316 = vld [vmem:[%s293 + $0x70] sm:$0xff]
        %v317 = vld [vmem:[%s293 + $0x78] sm:$0xff]
        %v318 = vld [vmem:[%s2] sm:$0xff]
        %v319 = vld [vmem:[%s2 + $0x8] sm:$0xff]
        %v320 = vld [vmem:[%s2 + $0x10] sm:$0xff]
        %v321 = vld [vmem:[%s2 + $0x18] sm:$0xff]
        %v322 = vld [vmem:[%s299] sm:$0xff]
        %v323 = vld [vmem:[%s299 + $0x8] sm:$0xff]
        %v324 = vld [vmem:[%s299 + $0x10] sm:$0xff]
        %v325 = vld [vmem:[%s299 + $0x18] sm:$0xff]
        %v326 = vld [vmem:[%s299 + $0x20] sm:$0xff]
        %v327 = vld [vmem:[%s299 + $0x28] sm:$0xff]
        %v328 = vld [vmem:[%s299 + $0x30] sm:$0xff]
        %v329 = vld [vmem:[%s299 + $0x38] sm:$0xff]
        %v330 = vld [vmem:[%s299 + $0x40] sm:$0xff]
        %v331 = vld [vmem:[%s299 + $0x48] sm:$0xff]
        %v332 = vld [vmem:[%s299 + $0x50] sm:$0xff]
        %v333 = vld [vmem:[%s299 + $0x58] sm:$0xff]
        %v334 = vld [vmem:[%s299 + $0x60] sm:$0xff]
        %v335 = vld [vmem:[%s299 + $0x68] sm:$0xff]
        %v336 = vld [vmem:[%s299 + $0x70] sm:$0xff]
        %v337 = vld [vmem:[%s299 + $0x78] sm:$0xff]
        %v338 = vld [vmem:[%s3] sm:$0xff]
        %v339 = vld [vmem:[%s3 + $0x8] sm:$0xff]
        %v340 = vld [vmem:[%s3 + $0x10] sm:$0xff]
        %vm341 = vcmask 195584
        %v343 = vsel %vm341, %v322, 0
        %v346 = vsel %vm341, %v323, 0
        %v349 = vsel %vm341, %v324, 0
        %v352 = vsel %vm341, %v325, 0
        %v355 = vsel %vm341, %v326, 0
        %v358 = vsel %vm341, %v327, 0
        %v361 = vsel %vm341, %v328, 0
        %v364 = vsel %vm341, %v329, 0
        %v367 = vsel %vm341, %v330, 0
        %v370 = vsel %vm341, %v331, 0
        %v373 = vsel %vm341, %v332, 0
        %v376 = vsel %vm341, %v333, 0
        %v379 = vsel %vm341, %v334, 0
        %v382 = vsel %vm341, %v335, 0
        %v385 = vsel %vm341, %v336, 0
        %v388 = vsel %vm341, %v337, 0
        %390 = vmatpush.msra.mxu0 0.0
        %391 = vmatpush.msra.mxu0 0.0
        %392 = vmatpush.msra.mxu0 0.0
        %393 = vmatpush.msra.mxu0 0.0
        %394 = vmatpush.msra.mxu0 0.0
        %395 = vmatpush.msra.mxu0 0.0
        %396 = vmatpush.msra.mxu0 0.0
        %397 = vmatpush.msra.mxu0 0.0
        %398 = vmatpush.msra.mxu0 0.0
        %399 = vmatpush.msra.mxu0 0.0
        %400 = vmatpush.msra.mxu0 0.0
        %401 = vmatpush.msra.mxu0 0.0
        %402 = vmatpush.msra.mxu0 0.0
        %403 = vmatpush.msra.mxu0 %v340
        %404 = vmatpush.msra.mxu0 %v339
        %405 = vmatpush.msra.mxu0 %v338
        %406 = vmatmul.f32.gmra.mxu0 %v343
        %v407 = vpop.f32.mrf.mxu0
        %v408 = vadd.f32 0.0, %v407
        %409 = vmatmul.f32.gmra.mxu0 %v346
        %v410 = vpop.f32.mrf.mxu0
        %v411 = vadd.f32 0.0, %v410
        %412 = vmatmul.f32.gmra.mxu0 %v349
        %v413 = vpop.f32.mrf.mxu0
        %v414 = vadd.f32 0.0, %v413
        %415 = vmatmul.f32.gmra.mxu0 %v352
        %v416 = vpop.f32.mrf.mxu0
        %v417 = vadd.f32 0.0, %v416
        %418 = vmatmul.f32.gmra.mxu0 %v355
        %v419 = vpop.f32.mrf.mxu0
        %v420 = vadd.f32 0.0, %v419
        %421 = vmatmul.f32.gmra.mxu0 %v358
        %v422 = vpop.f32.mrf.mxu0
        %v423 = vadd.f32 0.0, %v422
        %424 = vmatmul.f32.gmra.mxu0 %v361
        %v425 = vpop.f32.mrf.mxu0
        %v426 = vadd.f32 0.0, %v425
        %427 = vmatmul.f32.gmra.mxu0 %v364
        %v428 = vpop.f32.mrf.mxu0
        %v429 = vadd.f32 0.0, %v428
        %430 = vmatmul.f32.gmra.mxu0 %v367
        %v431 = vpop.f32.mrf.mxu0
        %v432 = vadd.f32 0.0, %v431
        %433 = vmatmul.f32.gmra.mxu0 %v370
        %v434 = vpop.f32.mrf.mxu0
        %v435 = vadd.f32 0.0, %v434
        %436 = vmatmul.f32.gmra.mxu0 %v373
        %v437 = vpop.f32.mrf.mxu0
        %v438 = vadd.f32 0.0, %v437
        %439 = vmatmul.f32.gmra.mxu0 %v376
        %v440 = vpop.f32.mrf.mxu0
        %v441 = vadd.f32 0.0, %v440
        %442 = vmatmul.f32.gmra.mxu0 %v379
        %v443 = vpop.f32.mrf.mxu0
        %v444 = vadd.f32 0.0, %v443
        %445 = vmatmul.f32.gmra.mxu0 %v382
        %v446 = vpop.f32.mrf.mxu0
        %v447 = vadd.f32 0.0, %v446
        %448 = vmatmul.f32.gmra.mxu0 %v385
        %v449 = vpop.f32.mrf.mxu0
        %v450 = vadd.f32 0.0, %v449
        %451 = vmatmul.f32.gmra.mxu0 %v388
        %v452 = vpop.f32.mrf.mxu0
        %v453 = vadd.f32 0.0, %v452
        %454 = vdwg.mxu0
        %vm455 = vcmask 261120
        %v457 = vsel %vm455, %v302, 0
        %v460 = vsel %vm455, %v303, 0
        %v463 = vsel %vm455, %v304, 0
        %v466 = vsel %vm455, %v305, 0
        %v469 = vsel %vm455, %v306, 0
        %v472 = vsel %vm455, %v307, 0
        %v475 = vsel %vm455, %v308, 0
        %v478 = vsel %vm455, %v309, 0
        %v481 = vsel %vm455, %v310, 0
        %v484 = vsel %vm455, %v311, 0
        %v487 = vsel %vm455, %v312, 0
        %v490 = vsel %vm455, %v313, 0
        %v493 = vsel %vm455, %v314, 0
        %v496 = vsel %vm455, %v315, 0
        %v499 = vsel %vm455, %v316, 0
        %v502 = vsel %vm455, %v317, 0
        %504 = vmatpush.msra.mxu0 0.0
        %505 = vmatpush.msra.mxu0 0.0
        %506 = vmatpush.msra.mxu0 0.0
        %507 = vmatpush.msra.mxu0 0.0
        %508 = vmatpush.msra.mxu0 0.0
        %509 = vmatpush.msra.mxu0 0.0
        %510 = vmatpush.msra.mxu0 0.0
        %511 = vmatpush.msra.mxu0 0.0
        %512 = vmatpush.msra.mxu0 0.0
        %513 = vmatpush.msra.mxu0 0.0
        %514 = vmatpush.msra.mxu0 0.0
        %515 = vmatpush.msra.mxu0 0.0
        %516 = vmatpush.msra.mxu0 %v321
        %517 = vmatpush.msra.mxu0 %v320
        %518 = vmatpush.msra.mxu0 %v319
        %519 = vmatpush.msra.mxu0 %v318
        %520 = vmatmul.f32.gmra.mxu0 %v457
        %v521 = vpop.f32.mrf.mxu0
        %v522 = vadd.f32 %v408, %v521
        %523 = vmatmul.f32.gmra.mxu0 %v460
        %v524 = vpop.f32.mrf.mxu0
        %v525 = vadd.f32 %v411, %v524
        %526 = vmatmul.f32.gmra.mxu0 %v463
        %v527 = vpop.f32.mrf.mxu0
        %v528 = vadd.f32 %v414, %v527
        %529 = vmatmul.f32.gmra.mxu0 %v466
        %v530 = vpop.f32.mrf.mxu0
        %v531 = vadd.f32 %v417, %v530
        %532 = vmatmul.f32.gmra.mxu0 %v469
        %v533 = vpop.f32.mrf.mxu0
        %v534 = vadd.f32 %v420, %v533
        %535 = vmatmul.f32.gmra.mxu0 %v472
        %v536 = vpop.f32.mrf.mxu0
        %v537 = vadd.f32 %v423, %v536
        %538 = vmatmul.f32.gmra.mxu0 %v475
        %v539 = vpop.f32.mrf.mxu0
        %v540 = vadd.f32 %v426, %v539
        %541 = vmatmul.f32.gmra.mxu0 %v478
        %v542 = vpop.f32.mrf.mxu0
        %v543 = vadd.f32 %v429, %v542
        %544 = vmatmul.f32.gmra.mxu0 %v481
        %v545 = vpop.f32.mrf.mxu0
        %v546 = vadd.f32 %v432, %v545
        %547 = vmatmul.f32.gmra.mxu0 %v484
        %v548 = vpop.f32.mrf.mxu0
        %v549 = vadd.f32 %v435, %v548
        %550 = vmatmul.f32.gmra.mxu0 %v487
        %v551 = vpop.f32.mrf.mxu0
        %v552 = vadd.f32 %v438, %v551
        %553 = vmatmul.f32.gmra.mxu0 %v490
        %v554 = vpop.f32.mrf.mxu0
        %v555 = vadd.f32 %v441, %v554
        %556 = vmatmul.f32.gmra.mxu0 %v493
        %v557 = vpop.f32.mrf.mxu0
        %v558 = vadd.f32 %v444, %v557
        %559 = vmatmul.f32.gmra.mxu0 %v496
        %v560 = vpop.f32.mrf.mxu0
        %v561 = vadd.f32 %v447, %v560
        %562 = vmatmul.f32.gmra.mxu0 %v499
        %v563 = vpop.f32.mrf.mxu0
        %v564 = vadd.f32 %v450, %v563
        %565 = vmatmul.f32.gmra.mxu0 %v502
        %v566 = vpop.f32.mrf.mxu0
        %v567 = vadd.f32 %v453, %v566
        %568 = vdwg.mxu0
        %v569 = vld [vmem:[%s4] sm:$0x1]
        %v571 = vperm.slane %v569, 0
        %v573 = vadd.f32 %v522, %v571
        %v574 = vadd.f32 %v525, %v571
        %v575 = vadd.f32 %v528, %v571
        %v576 = vadd.f32 %v531, %v571
        %v577 = vadd.f32 %v534, %v571
        %v578 = vadd.f32 %v537, %v571
        %v579 = vadd.f32 %v540, %v571
        %v580 = vadd.f32 %v543, %v571
        %v581 = vadd.f32 %v546, %v571
        %v582 = vadd.f32 %v549, %v571
        %v583 = vadd.f32 %v552, %v571
        %v584 = vadd.f32 %v555, %v571
        %v585 = vadd.f32 %v558, %v571
        %v586 = vadd.f32 %v561, %v571
        %v587 = vadd.f32 %v564, %v571
        %v588 = vadd.f32 %v567, %v571
        %v589 = vmax.f32 %v573, 0.0
        %v590 = vmax.f32 %v574, 0.0
        %v591 = vmax.f32 %v575, 0.0
        %v592 = vmax.f32 %v576, 0.0
        %v593 = vmax.f32 %v577, 0.0
        %v594 = vmax.f32 %v578, 0.0
        %v595 = vmax.f32 %v579, 0.0
        %v596 = vmax.f32 %v580, 0.0
        %v597 = vmax.f32 %v581, 0.0
        %v598 = vmax.f32 %v582, 0.0
        %v599 = vmax.f32 %v583, 0.0
        %v600 = vmax.f32 %v584, 0.0
        %v601 = vmax.f32 %v585, 0.0
        %v602 = vmax.f32 %v586, 0.0
        %v603 = vmax.f32 %v587, 0.0
        %v604 = vmax.f32 %v588, 0.0
        %v605 = vld [vmem:[%s5] sm:$0xff]
        %v606 = vld [vmem:[%s5 + $0x8] sm:$0xff]
        %v607 = vld [vmem:[%s5 + $0x10] sm:$0xff]
        %v608 = vld [vmem:[%s5 + $0x18] sm:$0xff]
        %v609 = vld [vmem:[%s5 + $0x20] sm:$0xff]
        %v610 = vld [vmem:[%s5 + $0x28] sm:$0xff]
        %v611 = vld [vmem:[%s5 + $0x30] sm:$0xff]
        %v612 = vld [vmem:[%s5 + $0x38] sm:$0xff]
        %v613 = vld [vmem:[%s6] sm:$0x1]
        %v615 = vperm.slane %v613, 0
        %vm617 = vcmask 523264
        %v619 = vsel %vm617, %v589, 0
        %v622 = vsel %vm617, %v590, 0
        %v625 = vsel %vm617, %v591, 0
        %v628 = vsel %vm617, %v592, 0
        %v631 = vsel %vm617, %v593, 0
        %v634 = vsel %vm617, %v594, 0
        %v637 = vsel %vm617, %v595, 0
        %v640 = vsel %vm617, %v596, 0
        %v643 = vsel %vm617, %v597, 0
        %v646 = vsel %vm617, %v598, 0
        %v649 = vsel %vm617, %v599, 0
        %v652 = vsel %vm617, %v600, 0
        %v655 = vsel %vm617, %v601, 0
        %v658 = vsel %vm617, %v602, 0
        %v661 = vsel %vm617, %v603, 0
        %v664 = vsel %vm617, %v604, 0
        %666 = vmatpush.msra.mxu0 0.0
        %667 = vmatpush.msra.mxu0 0.0
        %668 = vmatpush.msra.mxu0 0.0
        %669 = vmatpush.msra.mxu0 0.0
        %670 = vmatpush.msra.mxu0 0.0
        %671 = vmatpush.msra.mxu0 0.0
        %672 = vmatpush.msra.mxu0 0.0
        %673 = vmatpush.msra.mxu0 0.0
        %674 = vmatpush.msra.mxu0 %v612
        %675 = vmatpush.msra.mxu0 %v611
        %676 = vmatpush.msra.mxu0 %v610
        %677 = vmatpush.msra.mxu0 %v609
        %678 = vmatpush.msra.mxu0 %v608
        %679 = vmatpush.msra.mxu0 %v607
        %680 = vmatpush.msra.mxu0 %v606
        %681 = vmatpush.msra.mxu0 %v605
        %682 = vmatmul.f32.gmra.mxu0 %v619
        %v683 = vpop.f32.mrf.mxu0
        %v684 = vadd.f32 %v615, %v683
        %685 = vmatmul.f32.gmra.mxu0 %v622
        %v686 = vpop.f32.mrf.mxu0
        %v687 = vadd.f32 %v615, %v686
        %688 = vmatmul.f32.gmra.mxu0 %v625
        %v689 = vpop.f32.mrf.mxu0
        %v690 = vadd.f32 %v615, %v689
        %691 = vmatmul.f32.gmra.mxu0 %v628
        %v692 = vpop.f32.mrf.mxu0
        %v693 = vadd.f32 %v615, %v692
        %694 = vmatmul.f32.gmra.mxu0 %v631
        %v695 = vpop.f32.mrf.mxu0
        %v696 = vadd.f32 %v615, %v695
        %697 = vmatmul.f32.gmra.mxu0 %v634
        %v698 = vpop.f32.mrf.mxu0
        %v699 = vadd.f32 %v615, %v698
        %700 = vmatmul.f32.gmra.mxu0 %v637
        %v701 = vpop.f32.mrf.mxu0
        %v702 = vadd.f32 %v615, %v701
        %703 = vmatmul.f32.gmra.mxu0 %v640
        %v704 = vpop.f32.mrf.mxu0
        %v705 = vadd.f32 %v615, %v704
        %706 = vmatmul.f32.gmra.mxu0 %v643
        %v707 = vpop.f32.mrf.mxu0
        %v708 = vadd.f32 %v615, %v707
        %709 = vmatmul.f32.gmra.mxu0 %v646
        %v710 = vpop.f32.mrf.mxu0
        %v711 = vadd.f32 %v615, %v710
        %712 = vmatmul.f32.gmra.mxu0 %v649
        %v713 = vpop.f32.mrf.mxu0
        %v714 = vadd.f32 %v615, %v713
        %715 = vmatmul.f32.gmra.mxu0 %v652
        %v716 = vpop.f32.mrf.mxu0
        %v717 = vadd.f32 %v615, %v716
        %718 = vmatmul.f32.gmra.mxu0 %v655
        %v719 = vpop.f32.mrf.mxu0
        %v720 = vadd.f32 %v615, %v719
        %721 = vmatmul.f32.gmra.mxu0 %v658
        %v722 = vpop.f32.mrf.mxu0
        %v723 = vadd.f32 %v615, %v722
        %724 = vmatmul.f32.gmra.mxu0 %v661
        %v725 = vpop.f32.mrf.mxu0
        %v726 = vadd.f32 %v615, %v725
        %727 = vmatmul.f32.gmra.mxu0 %v664
        %v728 = vpop.f32.mrf.mxu0
        %v729 = vadd.f32 %v615, %v728
        %730 = vdwg.mxu0
        %v731 = vlaneseq
        %v732 = vand.u32 %v731, 127
        %vm733 = vcmp.ge.s32.totalorder %v732, 16
        %vm734 = vcmp.lt.s32.totalorder %v732, 32
        %vm735 = vmand %vm733, %vm734
        %vm736 = vcmp.gt.f32.partialorder %v684, 20.0
        %vm737 = vcmp.gt.f32.partialorder %v687, 20.0
        %vm738 = vcmp.gt.f32.partialorder %v690, 20.0
        %vm739 = vcmp.gt.f32.partialorder %v693, 20.0
        %vm740 = vcmp.gt.f32.partialorder %v696, 20.0
        %vm741 = vcmp.gt.f32.partialorder %v699, 20.0
        %vm742 = vcmp.gt.f32.partialorder %v702, 20.0
        %vm743 = vcmp.gt.f32.partialorder %v705, 20.0
        %vm744 = vcmp.gt.f32.partialorder %v708, 20.0
        %vm745 = vcmp.gt.f32.partialorder %v711, 20.0
        %vm746 = vcmp.gt.f32.partialorder %v714, 20.0
        %vm747 = vcmp.gt.f32.partialorder %v717, 20.0
        %vm748 = vcmp.gt.f32.partialorder %v720, 20.0
        %vm749 = vcmp.gt.f32.partialorder %v723, 20.0
        %vm750 = vcmp.gt.f32.partialorder %v726, 20.0
        %vm751 = vcmp.gt.f32.partialorder %v729, 20.0
        %v752 = vmin.f32 %v684, 20.0
        %v753 = vmin.f32 %v687, 20.0
        %v754 = vmin.f32 %v690, 20.0
        %v755 = vmin.f32 %v693, 20.0
        %v756 = vmin.f32 %v696, 20.0
        %v757 = vmin.f32 %v699, 20.0
        %v758 = vmin.f32 %v702, 20.0
        %v759 = vmin.f32 %v705, 20.0
        %v760 = vmin.f32 %v708, 20.0
        %v761 = vmin.f32 %v711, 20.0
        %v762 = vmin.f32 %v714, 20.0
        %v763 = vmin.f32 %v717, 20.0
        %v764 = vmin.f32 %v720, 20.0
        %v765 = vmin.f32 %v723, 20.0
        %v766 = vmin.f32 %v726, 20.0
        %v767 = vmin.f32 %v729, 20.0
        %v768 = vmul.f32 %v752, 1.442695
        %v769 = vpow.pop %v768
        %v770 = vmul.f32 %v753, 1.442695
        %v771 = vpow.pop %v770
        %v772 = vmul.f32 %v754, 1.442695
        %v773 = vpow.pop %v772
        %v774 = vmul.f32 %v755, 1.442695
        %v775 = vpow.pop %v774
        %v776 = vmul.f32 %v756, 1.442695
        %v777 = vpow.pop %v776
        %v778 = vmul.f32 %v757, 1.442695
        %v779 = vpow.pop %v778
        %v780 = vmul.f32 %v758, 1.442695
        %v781 = vpow.pop %v780
        %v782 = vmul.f32 %v759, 1.442695
        %v783 = vpow.pop %v782
        %v784 = vmul.f32 %v760, 1.442695
        %v785 = vpow.pop %v784
        %v786 = vmul.f32 %v761, 1.442695
        %v787 = vpow.pop %v786
        %v788 = vmul.f32 %v762, 1.442695
        %v789 = vpow.pop %v788
        %v790 = vmul.f32 %v763, 1.442695
        %v791 = vpow.pop %v790
        %v792 = vmul.f32 %v764, 1.442695
        %v793 = vpow.pop %v792
        %v794 = vmul.f32 %v765, 1.442695
        %v795 = vpow.pop %v794
        %v796 = vmul.f32 %v766, 1.442695
        %v797 = vpow.pop %v796
        %v798 = vmul.f32 %v767, 1.442695
        %v799 = vpow.pop %v798
        %v800 = vadd.f32 %v769, 1.0
        %v801 = vlog2.pop %v800
        %v802 = vmul.f32 %v801, 0.6931472
        %v803 = vmul.f32 -0.5, %v769
        %v804 = vadd.f32 %v803, 1.0
        %v805 = vmul.f32 %v804, %v769
        %v806 = vand.u32 2147483647, %v769
        %vm807 = vcmp.lt.f32.partialorder %v806, 0.0004427343
        %v808 = vsel %vm807, %v805, %v802
        %v809 = vadd.f32 %v771, 1.0
        %v810 = vlog2.pop %v809
        %v811 = vmul.f32 %v810, 0.6931472
        %v812 = vmul.f32 -0.5, %v771
        %v813 = vadd.f32 %v812, 1.0
        %v814 = vmul.f32 %v813, %v771
        %v815 = vand.u32 2147483647, %v771
        %vm816 = vcmp.lt.f32.partialorder %v815, 0.0004427343
        %v817 = vsel %vm816, %v814, %v811
        %v818 = vadd.f32 %v773, 1.0
        %v819 = vlog2.pop %v818
        %v820 = vmul.f32 %v819, 0.6931472
        %v821 = vmul.f32 -0.5, %v773
        %v822 = vadd.f32 %v821, 1.0
        %v823 = vmul.f32 %v822, %v773
        %v824 = vand.u32 2147483647, %v773
        %vm825 = vcmp.lt.f32.partialorder %v824, 0.0004427343
        %v826 = vsel %vm825, %v823, %v820
        %v827 = vadd.f32 %v775, 1.0
        %v828 = vlog2.pop %v827
        %v829 = vmul.f32 %v828, 0.6931472
        %v830 = vmul.f32 -0.5, %v775
        %v831 = vadd.f32 %v830, 1.0
        %v832 = vmul.f32 %v831, %v775
        %v833 = vand.u32 2147483647, %v775
        %vm834 = vcmp.lt.f32.partialorder %v833, 0.0004427343
        %v835 = vsel %vm834, %v832, %v829
        %v836 = vadd.f32 %v777, 1.0
        %v837 = vlog2.pop %v836
        %v838 = vmul.f32 %v837, 0.6931472
        %v839 = vmul.f32 -0.5, %v777
        %v840 = vadd.f32 %v839, 1.0
        %v841 = vmul.f32 %v840, %v777
        %v842 = vand.u32 2147483647, %v777
        %vm843 = vcmp.lt.f32.partialorder %v842, 0.0004427343
        %v844 = vsel %vm843, %v841, %v838
        %v845 = vadd.f32 %v779, 1.0
        %v846 = vlog2.pop %v845
        %v847 = vmul.f32 %v846, 0.6931472
        %v848 = vmul.f32 -0.5, %v779
        %v849 = vadd.f32 %v848, 1.0
        %v850 = vmul.f32 %v849, %v779
        %v851 = vand.u32 2147483647, %v779
        %vm852 = vcmp.lt.f32.partialorder %v851, 0.0004427343
        %v853 = vsel %vm852, %v850, %v847
        %v854 = vadd.f32 %v781, 1.0
        %v855 = vlog2.pop %v854
        %v856 = vmul.f32 %v855, 0.6931472
        %v857 = vmul.f32 -0.5, %v781
        %v858 = vadd.f32 %v857, 1.0
        %v859 = vmul.f32 %v858, %v781
        %v860 = vand.u32 2147483647, %v781
        %vm861 = vcmp.lt.f32.partialorder %v860, 0.0004427343
        %v862 = vsel %vm861, %v859, %v856
        %v863 = vadd.f32 %v783, 1.0
        %v864 = vlog2.pop %v863
        %v865 = vmul.f32 %v864, 0.6931472
        %v866 = vmul.f32 -0.5, %v783
        %v867 = vadd.f32 %v866, 1.0
        %v868 = vmul.f32 %v867, %v783
        %v869 = vand.u32 2147483647, %v783
        %vm870 = vcmp.lt.f32.partialorder %v869, 0.0004427343
        %v871 = vsel %vm870, %v868, %v865
        %v872 = vadd.f32 %v785, 1.0
        %v873 = vlog2.pop %v872
        %v874 = vmul.f32 %v873, 0.6931472
        %v875 = vmul.f32 -0.5, %v785
        %v876 = vadd.f32 %v875, 1.0
        %v877 = vmul.f32 %v876, %v785
        %v878 = vand.u32 2147483647, %v785
        %vm879 = vcmp.lt.f32.partialorder %v878, 0.0004427343
        %v880 = vsel %vm879, %v877, %v874
        %v881 = vadd.f32 %v787, 1.0
        %v882 = vlog2.pop %v881
        %v883 = vmul.f32 %v882, 0.6931472
        %v884 = vmul.f32 -0.5, %v787
        %v885 = vadd.f32 %v884, 1.0
        %v886 = vmul.f32 %v885, %v787
        %v887 = vand.u32 2147483647, %v787
        %vm888 = vcmp.lt.f32.partialorder %v887, 0.0004427343
        %v889 = vsel %vm888, %v886, %v883
        %v890 = vadd.f32 %v789, 1.0
        %v891 = vlog2.pop %v890
        %v892 = vmul.f32 %v891, 0.6931472
        %v893 = vmul.f32 -0.5, %v789
        %v894 = vadd.f32 %v893, 1.0
        %v895 = vmul.f32 %v894, %v789
        %v896 = vand.u32 2147483647, %v789
        %vm897 = vcmp.lt.f32.partialorder %v896, 0.0004427343
        %v898 = vsel %vm897, %v895, %v892
        %v899 = vadd.f32 %v791, 1.0
        %v900 = vlog2.pop %v899
        %v901 = vmul.f32 %v900, 0.6931472
        %v902 = vmul.f32 -0.5, %v791
        %v903 = vadd.f32 %v902, 1.0
        %v904 = vmul.f32 %v903, %v791
        %v905 = vand.u32 2147483647, %v791
        %vm906 = vcmp.lt.f32.partialorder %v905, 0.0004427343
        %v907 = vsel %vm906, %v904, %v901
        %v908 = vadd.f32 %v793, 1.0
        %v909 = vlog2.pop %v908
        %v910 = vmul.f32 %v909, 0.6931472
        %v911 = vmul.f32 -0.5, %v793
        %v912 = vadd.f32 %v911, 1.0
        %v913 = vmul.f32 %v912, %v793
        %v914 = vand.u32 2147483647, %v793
        %vm915 = vcmp.lt.f32.partialorder %v914, 0.0004427343
        %v916 = vsel %vm915, %v913, %v910
        %v917 = vadd.f32 %v795, 1.0
        %v918 = vlog2.pop %v917
        %v919 = vmul.f32 %v918, 0.6931472
        %v920 = vmul.f32 -0.5, %v795
        %v921 = vadd.f32 %v920, 1.0
        %v922 = vmul.f32 %v921, %v795
        %v923 = vand.u32 2147483647, %v795
        %vm924 = vcmp.lt.f32.partialorder %v923, 0.0004427343
        %v925 = vsel %vm924, %v922, %v919
        %v926 = vadd.f32 %v797, 1.0
        %v927 = vlog2.pop %v926
        %v928 = vmul.f32 %v927, 0.6931472
        %v929 = vmul.f32 -0.5, %v797
        %v930 = vadd.f32 %v929, 1.0
        %v931 = vmul.f32 %v930, %v797
        %v932 = vand.u32 2147483647, %v797
        %vm933 = vcmp.lt.f32.partialorder %v932, 0.0004427343
        %v934 = vsel %vm933, %v931, %v928
        %v935 = vadd.f32 %v799, 1.0
        %v936 = vlog2.pop %v935
        %v937 = vmul.f32 %v936, 0.6931472
        %v938 = vmul.f32 -0.5, %v799
        %v939 = vadd.f32 %v938, 1.0
        %v940 = vmul.f32 %v939, %v799
        %v941 = vand.u32 2147483647, %v799
        %vm942 = vcmp.lt.f32.partialorder %v941, 0.0004427343
        %v943 = vsel %vm942, %v940, %v937
        %v944 = vsel %vm736, %v684, %v808
        %v945 = vsel %vm737, %v687, %v817
        %v946 = vsel %vm738, %v690, %v826
        %v947 = vsel %vm739, %v693, %v835
        %v948 = vsel %vm740, %v696, %v844
        %v949 = vsel %vm741, %v699, %v853
        %v950 = vsel %vm742, %v702, %v862
        %v951 = vsel %vm743, %v705, %v871
        %v952 = vsel %vm744, %v708, %v880
        %v953 = vsel %vm745, %v711, %v889
        %v954 = vsel %vm746, %v714, %v898
        %v955 = vsel %vm747, %v717, %v907
        %v956 = vsel %vm748, %v720, %v916
        %v957 = vsel %vm749, %v723, %v925
        %v958 = vsel %vm750, %v726, %v934
        %v959 = vsel %vm751, %v729, %v943
        %v960 = vadd.f32 %v944, 0.0001
        %v961 = vadd.f32 %v945, 0.0001
        %v962 = vadd.f32 %v946, 0.0001
        %v963 = vadd.f32 %v947, 0.0001
        %v964 = vadd.f32 %v948, 0.0001
        %v965 = vadd.f32 %v949, 0.0001
        %v966 = vadd.f32 %v950, 0.0001
        %v967 = vadd.f32 %v951, 0.0001
        %v968 = vadd.f32 %v952, 0.0001
        %v969 = vadd.f32 %v953, 0.0001
        %v970 = vadd.f32 %v954, 0.0001
        %v971 = vadd.f32 %v955, 0.0001
        %v972 = vadd.f32 %v956, 0.0001
        %v973 = vadd.f32 %v957, 0.0001
        %v974 = vadd.f32 %v958, 0.0001
        %v975 = vadd.f32 %v959, 0.0001
        %v976 = vsel %vm735, %v960, %v684
        %v977 = vsel %vm735, %v961, %v687
        %v978 = vsel %vm735, %v962, %v690
        %v979 = vsel %vm735, %v963, %v693
        %v980 = vsel %vm735, %v964, %v696
        %v981 = vsel %vm735, %v965, %v699
        %v982 = vsel %vm735, %v966, %v702
        %v983 = vsel %vm735, %v967, %v705
        %v984 = vsel %vm735, %v968, %v708
        %v985 = vsel %vm735, %v969, %v711
        %v986 = vsel %vm735, %v970, %v714
        %v987 = vsel %vm735, %v971, %v717
        %v988 = vsel %vm735, %v972, %v720
        %v989 = vsel %vm735, %v973, %v723
        %v990 = vsel %vm735, %v974, %v726
        %v991 = vsel %vm735, %v975, %v729
        %992 = vst [vmem:[%s288] sm:$0xff] %v976
        %993 = vst [vmem:[%s288 + $0x8] sm:$0xff] %v977
        %994 = vst [vmem:[%s288 + $0x10] sm:$0xff] %v978
        %995 = vst [vmem:[%s288 + $0x18] sm:$0xff] %v979
        %996 = vst [vmem:[%s288 + $0x20] sm:$0xff] %v980
        %997 = vst [vmem:[%s288 + $0x28] sm:$0xff] %v981
        %998 = vst [vmem:[%s288 + $0x30] sm:$0xff] %v982
        %999 = vst [vmem:[%s288 + $0x38] sm:$0xff] %v983
        %1000 = vst [vmem:[%s288 + $0x40] sm:$0xff] %v984
        %1001 = vst [vmem:[%s288 + $0x48] sm:$0xff] %v985
        %1002 = vst [vmem:[%s288 + $0x50] sm:$0xff] %v986
        %1003 = vst [vmem:[%s288 + $0x58] sm:$0xff] %v987
        %1004 = vst [vmem:[%s288 + $0x60] sm:$0xff] %v988
        %1005 = vst [vmem:[%s288 + $0x68] sm:$0xff] %v989
        %1006 = vst [vmem:[%s288 + $0x70] sm:$0xff] %v990
        %1007 = vst [vmem:[%s288 + $0x78] sm:$0xff] %v991
        %s1008 = sand.u32 %s186, 1
        %s1009 = scalar_lea.sflag [#allocation3], %s1008
        %s1010 = sand.u32 %s186, 1
        %s1011 = smul.addr %s1010, 128
        %s1012 = scalar_lea.vmem [#allocation2], %s1011
        // Predicated region
        $region49: #{tpu_custom_call.1} parent=47 // pred_check
          %p1013 = pneg %p196
        $region50: #{tpu_custom_call.1} parent=47 // pred_check_branch
          %1015 = sbr.rel (%p1013) target = $region52
        $region51: #{tpu_custom_call.1} parent=47 // pred_region
          %s1016 = smul.u32 16, %s21
          %1018 = vsyncadd %s1009, 0
          %s1019 = smul.addr %s1016, 8
          %s1020 = scalar_lea.hbm %s7, %s1019
          %s1021 = sshll.u32 %s1012, 4
          %s1022 = int_to_ptr.vmem [resolvable:$true] %s1021
          %s1023 = sshll.u32 %s1020, 4
          %s1024 = int_to_ptr.hbm [resolvable:$true] %s1023
          %1029 = dma.vmem_to_hbm [thread:$0]  %s1022, 2048, %s1024, %s1009, 128, 128, 8
        $region52: #{tpu_custom_call.1} parent=47 // pred_fallthru
          _
      $region48: #{tpu_custom_call.1} parent=5 // pred_fallthru
        _
      %p1030 = scmp.le.s32.totalorder 2, %s16
      // Predicated region
      $region53: #{tpu_custom_call.1} parent=5 // pred_check
        %p1031 = pneg %p1030
      $region54: #{tpu_custom_call.1} parent=5 // pred_check_branch
        %1033 = sbr.rel (%p1031) target = $region56
      $region55: #{tpu_custom_call.1} parent=5 // pred_region
        %s1034 = ssub.s32 %s16, 2
        // Predicated region
        $region57: #{tpu_custom_call.1} parent=55 // pred_check
          %p1035 = pneg %p202
        $region58: #{tpu_custom_call.1} parent=55 // pred_check_branch
          %1037 = sbr.rel (%p1035) target = $region60
        $region59: #{tpu_custom_call.1} parent=55 // pred_region
          %s1038 = sand.u32 %s187, 1
          %s1039 = scalar_lea.sflag [#allocation3], %s1038
          %s1040 = sand.u32 %s187, 1
          %s1041 = smul.addr %s1040, 128
          %s1042 = scalar_lea.vmem [#allocation2], %s1041
          %1044 = dma.done %s1039, 2048
        $region60: #{tpu_custom_call.1} parent=55 // pred_fallthru
          _
      $region56: #{tpu_custom_call.1} parent=5 // pred_fallthru
        _
    $region6: #{tpu_custom_call.1} parent=1 // loop_footer
      %s20 = sadd.s32 1, %s16
    $region7: #{tpu_custom_call.1} parent=1 // loop_footer_branch
      %15 = sbr.rel target = $region3
    $region8: #{tpu_custom_call.1} parent=1 // loop_exit
      _
    %1045 = vsyncpa [#allocation3], 1
    %s1046 = scalar_lea.sflag [#allocation3], 1
    %1047 = vsyncpa %s1046, 1

</llo_original>
